<compile_context>
chip_gen: v6e
topology: v6e:2x2x1
jax: 0.10.0
libtpu: 0.0.40
codegen_flags: <defaults>
</compile_context>

<pallas_src>
import jax
import jax.numpy as jnp
from jax.experimental import pallas as pl
from jax.experimental.pallas import tpu as pltpu


_MAX_LANES = 1024                  # preferred lane-dense last dim
_TARGET_BLOCK_BYTES = 8 << 20      # 8 MiB per buffer (in + out double-buffered ~32 MiB)
_VMEM_LIMIT_BYTES = 48 << 20       # fits v7x's 64 MiB physical VMEM with headroom
_MIN_PALLAS_ELEMS = 1 << 20        # below this, let XLA's fused jnp.minimum handle it


def _min_kernel(bound_ref, x_ref, o_ref):
    # bound lives in SMEM (scalar slot, free); clamp is a single VPU min.
    # Note: bound is rounded to x's dtype for low-precision inputs (documented).
    o_ref[...] = jnp.minimum(x_ref[...], bound_ref[0].astype(x_ref.dtype))


def _pick_lanes(n: int) -> int:
    """Largest lane width in {1024,512,256,128} dividing n (0 if none)."""
    for lanes in (_MAX_LANES, 512, 256, 128):
        if n % lanes == 0:
            return lanes
    return 0


def _round_up(n: int, m: int) -> int:
    return ((n + m - 1) // m) * m


def _run_min_2d(x2d: jax.Array, bound_f32: jax.Array) -> jax.Array:
    """min(x2d, bound) for a lane-dense (rows, lanes) array via pallas_call."""
    rows, lanes = x2d.shape
    itemsize = jnp.dtype(x2d.dtype).itemsize

    # Constant-byte blocks across dtypes (multiple of 8 rows by construction).
    block_rows = max(8, _TARGET_BLOCK_BYTES // (lanes * itemsize))

    if rows <= 8:
        tm = rows                        # full extent -> always a legal block dim
    else:
        # At least 2 grid steps so both v7x TensorCores drive HBM, capped by the
        # 8 MiB block target; partial tail blocks are handled by the cdiv grid.
        tm = min(block_rows, max(8, _round_up(pl.cdiv(rows, 2), 8)))
    grid = (pl.cdiv(rows, tm),)

    return pl.pallas_call(
        _min_kernel,
        out_shape=jax.ShapeDtypeStruct((rows, lanes), x2d.dtype),
        grid=grid,
        in_specs=[
            pl.BlockSpec(memory_space=pltpu.MemorySpace.SMEM),   # bound scalar
            pl.BlockSpec((tm, lanes), lambda i: (i, 0)),         # x tile
        ],
        out_specs=pl.BlockSpec((tm, lanes), lambda i: (i, 0)),
        compiler_params=pltpu.CompilerParams(
            dimension_semantics=("parallel",),
            vmem_limit_bytes=_VMEM_LIMIT_BYTES,
        ),
    )(bound_f32.reshape(1), x2d)


def upper_bound_pallas(x: jax.Array, bound, *, force_pallas: bool = False) -> jax.Array:
    """Forward pass: elementwise min(x, bound) via a tiled Pallas kernel."""
    bound_f32 = jnp.asarray(bound, dtype=jnp.float32).reshape(())
    if x.size == 0:
        return x
    total = x.size

    if (not force_pallas) and total < _MIN_PALLAS_ELEMS:
        # Tiny tensors: standalone kernel launch + DMA overhead is not worth it,
        # and inside a larger jit XLA fuses this min into neighbors for free.
        return jnp.minimum(x, bound_f32.astype(x.dtype))

    flat = x.reshape(-1)                       # zero-copy
    lanes = _pick_lanes(total)
    if lanes:
        out2d = _run_min_2d(flat.reshape(total // lanes, lanes), bound_f32)
        return out2d.reshape(x.shape)

    # Flat size not a multiple of 128 (ragged).
    aligned = (total // 128) * 128
    if (not force_pallas) or aligned == 0:
        # Plain XLA elementwise min is already one HBM read + one write at
        # roofline; padding/slicing/concatenating around a Pallas call would
        # only add full-array copies for ragged shapes.
        return jnp.minimum(x, bound_f32.astype(x.dtype))

    # force_pallas: Pallas on the 128-aligned prefix, jnp.minimum on the
    # (<128-element) tail, stitched back together (review option (a)).
    head, tail = flat[:aligned], flat[aligned:]
    head_lanes = _pick_lanes(aligned)
    head_out = _run_min_2d(head.reshape(aligned // head_lanes, head_lanes),
                           bound_f32).reshape(-1)
    tail_out = jnp.minimum(tail, bound_f32.astype(x.dtype))
    return jnp.concatenate([head_out, tail_out]).reshape(x.shape)


# ---- custom VJP matching the PyTorch UpperBoundFunction ---------------------
# bound is a regular (non-recompiling) traced scalar; its cotangent is zero,
# matching the PyTorch backward's `None` for bound.
@jax.custom_vjp
def upper_bound(x: jax.Array, bound) -> jax.Array:
    return upper_bound_pallas(x, bound)


def _upper_bound_fwd(x, bound):
    return upper_bound_pallas(x, bound), (x, bound)


def _upper_bound_bwd(res, g):
    x, bound = res
    b = jnp.asarray(bound, dtype=x.dtype)
    # pass_through_if = (x <= bound) | (grad_output > 0)
    pass_through = (x <= b) | (g > 0)
    dx = jnp.where(pass_through, g, jnp.zeros_like(g))
    return dx, jnp.zeros_like(jnp.asarray(bound))


upper_bound.defvjp(_upper_bound_fwd, _upper_bound_bwd)


class UpperBound:
    """JAX/Pallas equivalent of the PyTorch UpperBound module."""

    def __init__(self, bound: float):
        self.bound = jnp.float32(bound)

    def __call__(self, x: jax.Array) -> jax.Array:
        return upper_bound(x, self.bound)


if __name__ == "__main__":
    key = jax.random.PRNGKey(0)
    k1, k2, k3, k4 = jax.random.split(key, 4)
    bound = 0.5
    module = UpperBound(bound)

    # 1) Small NCHW feature map — force the Pallas path (single block, lanes=1024).
    x = jax.random.normal(k1, (2, 4, 16, 16), dtype=jnp.float32)
    y = upper_bound_pallas(x, bound, force_pallas=True)
    jax.block_until_ready(y)
    ref = jnp.minimum(x, jnp.float32(bound))
    assert y.shape == x.shape and y.dtype == x.dtype
    assert jnp.allclose(y, ref), "mismatch vs reference (single block)"

    # Module path (tiny input takes the jnp.minimum fast path) + grad check.
    y_mod = module(x)
    assert jnp.allclose(y_mod, ref), "mismatch vs reference (module path)"
    g = jax.grad(lambda a: jnp.sum(module(a) * 2.0))(x)
    g_ref = jnp.where((x <= bound) | (jnp.full_like(x, 2.0) > 0), 2.0, 0.0)
    assert jnp.allclose(g, g_ref), "mismatch vs reference (custom vjp)"

    # 2) Divisible mid-size input exercising the >=2-step parallel grid
    #    (256 rows x 1024 lanes -> 2 blocks of 128 rows).
    x2 = jax.random.normal(k2, (8, 8, 64, 64), dtype=jnp.float32)
    y2 = upper_bound_pallas(x2, bound, force_pallas=True)
    jax.block_until_ready(y2)
    assert jnp.allclose(y2, jnp.minimum(x2, jnp.float32(bound))), \
        "mismatch vs reference (multi-tile grid)"

    # 3) Ragged flat size (not a multiple of 128): aligned prefix through Pallas
    #    (lanes=128, ragged row-tail block), <128-element tail via jnp.minimum.
    x3 = jax.random.normal(k3, (2, 3, 41, 53), dtype=jnp.float32)
    y3 = upper_bound_pallas(x3, bound, force_pallas=True)
    jax.block_until_ready(y3)
    assert jnp.allclose(y3, jnp.minimum(x3, jnp.float32(bound))), \
        "mismatch vs reference (ragged prefix + tail)"

    # 4) bf16 input through the Pallas path (dtype-aware block rows).
    x4 = jax.random.normal(k4, (3, 7, 33, 47), dtype=jnp.bfloat16)
    y4 = upper_bound_pallas(x4, bound, force_pallas=True)
    jax.block_until_ready(y4)
    assert y4.dtype == jnp.bfloat16
    assert jnp.allclose(y4, jnp.minimum(x4, jnp.bfloat16(bound))), \
        "mismatch vs reference (bf16)"

    print("KERNEL_OK")
</pallas_src>

<mosaic_0001>
module attributes {stable_mosaic.version = 11 : i64} {
  func.func @_min_kernel(%arg0: i32, %arg1: memref<1xf32, #tpu.memory_space<smem>>, %arg2: memref<2x1024xf32, #tpu.memory_space<vmem>>, %arg3: memref<2x1024xf32, #tpu.memory_space<vmem>>) attributes {dimension_semantics = [#tpu.dimension_semantics<parallel>], iteration_bounds = array<i64: 1>, scalar_prefetch = 0 : i64, scratch_operands = 0 : i64, tpu.core_type = #tpu.core_type<tc>, window_params = [{transform_indices = @transform_0, window_bounds = array<i64: 1>}, {transform_indices = @transform_1, window_bounds = array<i64: 2, 1024>}, {transform_indices = @transform_2, window_bounds = array<i64: 2, 1024>}]} {
    %c0 = arith.constant 0 : index
    %c0_0 = arith.constant 0 : index
    %0 = vector.load %arg2[%c0, %c0_0] : memref<2x1024xf32, #tpu.memory_space<vmem>>, vector<2x1024xf32>
    %c0_1 = arith.constant 0 : index
    %1 = memref.load %arg1[%c0_1] : memref<1xf32, #tpu.memory_space<smem>>
    %2 = vector.broadcast %1 : f32 to vector<2x1024xf32>
    %3 = arith.minimumf %0, %2 : vector<2x1024xf32>
    %c0_2 = arith.constant 0 : index
    %c0_3 = arith.constant 0 : index
    %4 = vector.load %arg3[%c0_2, %c0_3] : memref<2x1024xf32, #tpu.memory_space<vmem>>, vector<2x1024xf32>
    tpu.vector_store %arg3[%c0_2, %c0_3], %3 {strides = array<i32>} : memref<2x1024xf32, #tpu.memory_space<vmem>>, vector<2x1024xf32>,
    return
  }
  func.func @transform_0(%arg0: i32) -> i32 {
    %c0_i32 = arith.constant 0 : i32
    %c0_i32_0 = arith.constant 0 : i32
    return %c0_i32 : i32
  }
  func.func @transform_1(%arg0: i32) -> (i32, i32) {
    %c0_i32 = arith.constant 0 : i32
    %c0_i32_0 = arith.constant 0 : i32
    return %arg0, %c0_i32 : i32, i32
  }
  func.func @transform_2(%arg0: i32) -> (i32, i32) {
    %c0_i32 = arith.constant 0 : i32
    %c0_i32_0 = arith.constant 0 : i32
    return %arg0, %c0_i32 : i32, i32
  }
}

</mosaic_0001>

<llo_original>
// kernel: tpu_custom_call.1
$region0: #{tpu_custom_call.1}
  #allocation0 [shape = 'u32[]', space=smem, size = 0x4, offset = 0x4, fixed_abs, tag = 'smem constant byte address 0x4 - core index']
  #allocation1 [shape = 'u32[144,128]{1,0:T(1,128)}', space=vmem, size = 0x12000, scoped, tag = 'internal scratch']
  #allocation2 [shape = 'f32[1]{0:T(128)S(6)}', space=smem, size = 0x200, scoped, tag = 'scoped memory for tpu_custom_call.1']
  %s0 = inlined_call_operand.<no memory space> [shape: f32[1], index: 0, kind: input, shape index: {}]
  %s1 = inlined_call_operand.hbm [shape: f32[2,1024], index: 1, kind: input, shape index: {}]
  %s2 = inlined_call_operand.hbm [shape: f32[2,1024], index: 2, kind: output, shape index: {}]
  %s3 = sld [smem:[#allocation0]]
  $region22: #{tpu_custom_call.1} parent=0
    _
  %s5 = ssub.s32 1, %s3
  %s6 = scalar_select 0, %s5, %s3
  %7 = sst [smem:[#allocation2]] %s0
  $region1: #{tpu_custom_call.1} parent=0
    #allocation3 [shape = 'u8[8192]{0}', space=vmem, size = 0x2000, scoped, tag = 'input window, operand 1, single buffered']
    #allocation4 [shape = 's32[1]{0}', space=sflag, size = 0x4, scoped, tag = 'scoped memory for tpu_custom_call.1']
    #allocation5 [shape = 's32[1]{0}', space=sflag, size = 0x4, scoped, tag = 'scoped memory for tpu_custom_call.1']
    #allocation6 [shape = 'u8[8192]{0}', space=vmem, size = 0x2000, scoped, tag = 'output window, operand 0, single buffered']
    %8 = vsyncpa [#allocation4], 0
    %9 = vsyncpa [#allocation5], 0
    // Predicated region
    $region2: #{tpu_custom_call.1} parent=1 // pred_check
      _
    $region3: #{tpu_custom_call.1} parent=1 // pred_check_branch
      %11 = sbr.rel (0) target = $region5
    $region4: #{tpu_custom_call.1} parent=1 // pred_region
      _
    $region5: #{tpu_custom_call.1} parent=1 // pred_fallthru
      _
    // Predicated region
    $region6: #{tpu_custom_call.1} parent=1 // pred_check
      _
    $region7: #{tpu_custom_call.1} parent=1 // pred_check_branch
      %13 = sbr.rel (0) target = $region9
    $region8: #{tpu_custom_call.1} parent=1 // pred_region
      %s15 = ssub.s32 256, 256
      %16 = vsyncadd [#allocation4], %s15
      %s18 = sshll.u32 [#allocation3], 4
      %s19 = int_to_ptr.vmem [resolvable:$true] %s18
      %21 = dma.hbm_to_vmem [thread:$0]  %s1, 256, %s19, [#allocation4]
    $region9: #{tpu_custom_call.1} parent=1 // pred_fallthru
      _
    // Predicated region
    $region10: #{tpu_custom_call.1} parent=1 // pred_check
      _
    $region11: #{tpu_custom_call.1} parent=1 // pred_check_branch
      %23 = sbr.rel (0) target = $region13
    $region12: #{tpu_custom_call.1} parent=1 // pred_region
      %24 = dma.done [#allocation4], 256
    $region13: #{tpu_custom_call.1} parent=1 // pred_fallthru
      _
    %v25 = vld [vmem:[#allocation3] sm:$0xff]
    %v26 = vld [vmem:[#allocation3 + $0x8] sm:$0xff]
    %s27 = sld [smem:[#allocation2]]
    %v28 = vstv %s27
    %v29 = vmin.f32 %v25, %v28
    %v30 = vmin.f32 %v26, %v28
    %31 = vst [vmem:[#allocation6] sm:$0xff] %v29
    %32 = vst [vmem:[#allocation6 + $0x8] sm:$0xff] %v30
    // Predicated region
    $region14: #{tpu_custom_call.1} parent=1 // pred_check
      _
    $region15: #{tpu_custom_call.1} parent=1 // pred_check_branch
      %34 = sbr.rel (0) target = $region17
    $region16: #{tpu_custom_call.1} parent=1 // pred_region
      %s36 = ssub.s32 256, 256
      %37 = vsyncadd [#allocation5], %s36
      %s39 = sshll.u32 [#allocation6], 4
      %s40 = int_to_ptr.vmem [resolvable:$true] %s39
      %42 = dma.vmem_to_hbm [thread:$0]  %s40, 256, %s2, [#allocation5]
    $region17: #{tpu_custom_call.1} parent=1 // pred_fallthru
      _
    // Predicated region
    $region18: #{tpu_custom_call.1} parent=1 // pred_check
      _
    $region19: #{tpu_custom_call.1} parent=1 // pred_check_branch
      %44 = sbr.rel (0) target = $region21
    $region20: #{tpu_custom_call.1} parent=1 // pred_region
      %45 = dma.done [#allocation5], 256
    $region21: #{tpu_custom_call.1} parent=1 // pred_fallthru
      _
    %46 = vsyncpa [#allocation4], 1
    %47 = vsyncpa [#allocation5], 1

</llo_original>
